<compile_context>
chip_gen: v7x
topology: tpu7x:2x2x1
jax: 0.10.0
libtpu: 0.0.40
codegen_flags: <defaults>
</compile_context>

<pallas_src>
import jax
import jax.numpy as jnp
from jax.experimental import pallas as pl
from jax.experimental.pallas import tpu as pltpu


_VMEM_LIMIT_BYTES = 60 * 1024 * 1024    # <= physical VMEM on every gen (v7x: 64 MiB)
_BLOCK_BUDGET_BYTES = 40 * 1024 * 1024  # budget for the pipelined blocks


def _mlp_kernel(x_ref, w1_ref, b1_ref, w2_ref, b2_ref, o_ref):
    # fc1 + ReLU: bf16 MXU matmul, f32 accumulate, f32 bias/ReLU.
    h1 = jnp.dot(x_ref[...], w1_ref[...], preferred_element_type=jnp.float32)
    h1 = jnp.maximum(h1 + b1_ref[...], 0.0)
    # fc2 (this output-column tile) + ReLU.
    h2 = jnp.dot(h1.astype(jnp.bfloat16), w2_ref[...],
                 preferred_element_type=jnp.float32)
    h2 = jnp.maximum(h2 + b2_ref[...], 0.0)
    o_ref[...] = h2.astype(o_ref.dtype)


def _round_up(x, m):
    return ((x + m - 1) // m) * m


def _pick_tn(H):
    """Largest multiple of 128 (<=512) that divides H; else the full dim."""
    for cand in (512, 256, 128):
        if cand <= H and H % cand == 0:
            return cand
    return H


def _block_vmem_bytes(tb, tn, d_in, H):
    x_b = 2 * tb * d_in * 2          # bf16 input, double-buffered (changes per b)
    w1_b = d_in * H * 2              # bf16, resident, Buffered(1)
    b1_b = H * 4                     # f32, resident, Buffered(1)
    w2_b = 2 * H * tn * 2            # bf16, double-buffered (changes per n)
    b2_b = 2 * tn * 4                # f32
    out_b = 2 * tb * tn * 4          # f32 output, double-buffered
    return x_b + w1_b + b1_b + w2_b + b2_b + out_b


def linear_base_forward(state, w1, b1, w2, b2):
    """state: (B, D_in) f32; w1: (D_in, H) bf16; b1: (1, H) f32;
    w2: (H, H) bf16; b2: (1, H) f32.

    Returns relu(relu(state @ w1 + b1) @ w2 + b2) in f32.  Matmuls run on the
    MXU in bf16 with f32 accumulation; bias-add + ReLU stay in f32.
    """
    B, d_in = state.shape
    H = w1.shape[1]

    # ---- tile sizes -----------------------------------------------------
    tn = _pick_tn(H)
    tb = min(512, _round_up(B, 16))

    # v7x has 2 TensorCores: ensure >=2 grid programs when the problem allows
    # it (no effect on v5e/v6e's single core).
    if H // tn == 1 and _round_up(B, 16) >= 32:
        tb = min(tb, _round_up((B + 1) // 2, 16))

    # Shrink tiles (w2/out column tile first, then batch tile) until the
    # pipelined blocks fit the per-generation-safe VMEM budget.
    while _block_vmem_bytes(tb, tn, d_in, H) > _BLOCK_BUDGET_BYTES:
        if tn > 128 and tn % 256 == 0:
            tn //= 2
        elif tb > 16:
            tb = max(16, _round_up(tb // 2, 16))
        else:
            break
    # TODO(synk): if the resident D_in*H bf16 w1 alone exceeds the budget
    # (large models), additionally tile fc1's hidden (N) axis inside the
    # kernel (pltpu.emit_pipeline or an extra grid axis).

    # ---- pad batch to a multiple of the batch tile ------------------------
    Bp = _round_up(B, tb)
    x = state if Bp == B else jnp.pad(state, ((0, Bp - B), (0, 0)))
    x_bf = x.astype(jnp.bfloat16)           # activations only; weights already bf16

    w1_bf = w1.astype(jnp.bfloat16)          # no-op when params are stored in bf16
    w2_bf = w2.astype(jnp.bfloat16)
    b1_f = b1.astype(jnp.float32).reshape(1, H)
    b2_f = b2.astype(jnp.float32).reshape(1, H)

    grid = (H // tn, Bp // tb)               # n outer (w2 streams once), b inner

    out = pl.pallas_call(
        _mlp_kernel,
        out_shape=jax.ShapeDtypeStruct((Bp, H), jnp.float32),
        grid=grid,
        in_specs=[
            pl.BlockSpec((tb, d_in), lambda n, b: (b, 0)),            # x batch tile
            pl.BlockSpec((d_in, H), lambda n, b: (0, 0),
                         pipeline_mode=pl.Buffered(1)),               # w1 resident
            pl.BlockSpec((1, H), lambda n, b: (0, 0),
                         pipeline_mode=pl.Buffered(1)),               # b1 resident
            pl.BlockSpec((H, tn), lambda n, b: (0, n)),               # w2 column tile
            pl.BlockSpec((1, tn), lambda n, b: (0, n)),               # b2 column tile
        ],
        out_specs=pl.BlockSpec((tb, tn), lambda n, b: (b, n)),
        compiler_params=pltpu.CompilerParams(
            dimension_semantics=("parallel", "parallel"),
            vmem_limit_bytes=_VMEM_LIMIT_BYTES),
    )(x_bf, w1_bf, b1_f, w2_bf, b2_f)

    return out if Bp == B else out[:B]


def init_linear_base_params(key, input_dims, hidden):
    """PyTorch-style nn.Linear init (uniform +/- 1/sqrt(fan_in)).

    Weights are returned already transposed to (in, out) layout and cast to
    bf16 ONCE here, so the forward never re-casts them per call.
    """
    k1, k2, k3, k4 = jax.random.split(key, 4)
    bound1 = 1.0 / float(input_dims) ** 0.5
    bound2 = 1.0 / float(hidden) ** 0.5
    w1 = jax.random.uniform(k1, (input_dims, hidden), jnp.float32, -bound1, bound1)
    b1 = jax.random.uniform(k2, (1, hidden), jnp.float32, -bound1, bound1)
    w2 = jax.random.uniform(k3, (hidden, hidden), jnp.float32, -bound2, bound2)
    b2 = jax.random.uniform(k4, (1, hidden), jnp.float32, -bound2, bound2)
    return w1.astype(jnp.bfloat16), b1, w2.astype(jnp.bfloat16), b2


if __name__ == "__main__":
    B = 8            # batch
    INPUT_DIMS = 32  # input_dims
    HIDDEN = 256     # hidden_dims[0]

    key = jax.random.PRNGKey(0)
    k_x, k_p = jax.random.split(key)
    state = jax.random.normal(k_x, (B, INPUT_DIMS), dtype=jnp.float32)
    w1, b1, w2, b2 = init_linear_base_params(k_p, INPUT_DIMS, HIDDEN)

    out = linear_base_forward(state, w1, b1, w2, b2)
    out = jax.block_until_ready(out)
    assert out.shape == (B, HIDDEN)
    assert out.dtype == jnp.float32

    # Reference with the same bf16-matmul / f32-accumulate semantics.
    ref_h1 = jnp.maximum(
        jnp.dot(state.astype(jnp.bfloat16), w1,
                preferred_element_type=jnp.float32) + b1, 0.0)
    ref = jnp.maximum(
        jnp.dot(ref_h1.astype(jnp.bfloat16), w2,
                preferred_element_type=jnp.float32) + b2, 0.0)
    assert jnp.allclose(out, ref, atol=1e-3, rtol=1e-3), (
        float(jnp.max(jnp.abs(out - ref))))

    # Loose sanity check against an all-f32 PyTorch-style reference (loose
    # tolerance because the kernel intentionally uses bf16 weights/activations).
    ref_f32 = jnp.maximum(
        jnp.maximum(state @ w1.astype(jnp.float32) + b1, 0.0)
        @ w2.astype(jnp.float32) + b2, 0.0)
    assert jnp.allclose(out, ref_f32, atol=5e-2, rtol=5e-2)

    print("KERNEL_OK")
</pallas_src>

<mosaic_0001>
module attributes {stable_mosaic.version = 11 : i64} {
  func.func @_mlp_kernel(%arg0: i32, %arg1: i32, %arg2: memref<16x32xbf16, #tpu.memory_space<vmem>>, %arg3: memref<32x256xbf16, #tpu.memory_space<vmem>>, %arg4: memref<1x256xf32, #tpu.memory_space<vmem>>, %arg5: memref<256x256xbf16, #tpu.memory_space<vmem>>, %arg6: memref<1x256xf32, #tpu.memory_space<vmem>>, %arg7: memref<16x256xf32, #tpu.memory_space<vmem>>) attributes {dimension_semantics = [#tpu.dimension_semantics<parallel>, #tpu.dimension_semantics<parallel>], iteration_bounds = array<i64: 1, 1>, scalar_prefetch = 0 : i64, scratch_operands = 0 : i64, tpu.core_type = #tpu.core_type<tc>, window_params = [{transform_indices = @transform_0, window_bounds = array<i64: 16, 32>}, {pipeline_mode = #tpu.pipeline_mode<synchronous>, transform_indices = @transform_1, window_bounds = array<i64: 32, 256>}, {pipeline_mode = #tpu.pipeline_mode<synchronous>, transform_indices = @transform_2, window_bounds = array<i64: 1, 256>}, {transform_indices = @transform_3, window_bounds = array<i64: 256, 256>}, {transform_indices = @transform_4, window_bounds = array<i64: 1, 256>}, {transform_indices = @transform_5, window_bounds = array<i64: 16, 256>}]} {
    %c0 = arith.constant 0 : index
    %c0_0 = arith.constant 0 : index
    %0 = vector.load %arg2[%c0, %c0_0] : memref<16x32xbf16, #tpu.memory_space<vmem>>, vector<16x32xbf16>
    %c0_1 = arith.constant 0 : index
    %c0_2 = arith.constant 0 : index
    %1 = vector.load %arg3[%c0_1, %c0_2] : memref<32x256xbf16, #tpu.memory_space<vmem>>, vector<32x256xbf16>
    %cst = arith.constant dense<0.000000e+00> : vector<16x256xf32>
    %2 = tpu.matmul %0, %1, %cst {dimension_numbers = #tpu.dot_dimension_numbers<[1], [0], [0], [1], [0, 0, 1, 1], [], []>} : vector<16x32xbf16>, vector<32x256xbf16>, vector<16x256xf32> -> vector<16x256xf32>
    %c0_3 = arith.constant 0 : index
    %c0_4 = arith.constant 0 : index
    %3 = vector.load %arg4[%c0_3, %c0_4] : memref<1x256xf32, #tpu.memory_space<vmem>>, vector<1x256xf32>
    %4 = vector.broadcast %3 : vector<1x256xf32> to vector<16x256xf32>
    %5 = arith.addf %2, %4 : vector<16x256xf32>
    %cst_5 = arith.constant 0.000000e+00 : f32
    %6 = vector.broadcast %cst_5 : f32 to vector<16x256xf32>
    %7 = arith.maximumf %5, %6 : vector<16x256xf32>
    %8 = arith.truncf %7 : vector<16x256xf32> to vector<16x256xbf16>
    %c0_6 = arith.constant 0 : index
    %c0_7 = arith.constant 0 : index
    %9 = vector.load %arg5[%c0_6, %c0_7] : memref<256x256xbf16, #tpu.memory_space<vmem>>, vector<256x256xbf16>
    %cst_8 = arith.constant dense<0.000000e+00> : vector<16x256xf32>
    %10 = tpu.matmul %8, %9, %cst_8 {dimension_numbers = #tpu.dot_dimension_numbers<[1], [0], [0], [1], [0, 0, 1, 1], [], []>} : vector<16x256xbf16>, vector<256x256xbf16>, vector<16x256xf32> -> vector<16x256xf32>
    %c0_9 = arith.constant 0 : index
    %c0_10 = arith.constant 0 : index
    %11 = vector.load %arg6[%c0_9, %c0_10] : memref<1x256xf32, #tpu.memory_space<vmem>>, vector<1x256xf32>
    %12 = vector.broadcast %11 : vector<1x256xf32> to vector<16x256xf32>
    %13 = arith.addf %10, %12 : vector<16x256xf32>
    %cst_11 = arith.constant 0.000000e+00 : f32
    %14 = vector.broadcast %cst_11 : f32 to vector<16x256xf32>
    %15 = arith.maximumf %13, %14 : vector<16x256xf32>
    %c0_12 = arith.constant 0 : index
    %c0_13 = arith.constant 0 : index
    %16 = vector.load %arg7[%c0_12, %c0_13] : memref<16x256xf32, #tpu.memory_space<vmem>>, vector<16x256xf32>
    tpu.vector_store %arg7[%c0_12, %c0_13], %15 {strides = array<i32>} : memref<16x256xf32, #tpu.memory_space<vmem>>, vector<16x256xf32>,
    return
  }
  func.func @transform_0(%arg0: i32, %arg1: i32) -> (i32, i32) {
    %c0_i32 = arith.constant 0 : i32
    %c0_i32_0 = arith.constant 0 : i32
    return %arg1, %c0_i32 : i32, i32
  }
  func.func @transform_1(%arg0: i32, %arg1: i32) -> (i32, i32) {
    %c0_i32 = arith.constant 0 : i32
    %c0_i32_0 = arith.constant 0 : i32
    %c0_i32_1 = arith.constant 0 : i32
    return %c0_i32, %c0_i32_0 : i32, i32
  }
  func.func @transform_2(%arg0: i32, %arg1: i32) -> (i32, i32) {
    %c0_i32 = arith.constant 0 : i32
    %c0_i32_0 = arith.constant 0 : i32
    %c0_i32_1 = arith.constant 0 : i32
    return %c0_i32, %c0_i32_0 : i32, i32
  }
  func.func @transform_3(%arg0: i32, %arg1: i32) -> (i32, i32) {
    %c0_i32 = arith.constant 0 : i32
    %c0_i32_0 = arith.constant 0 : i32
    return %c0_i32, %arg0 : i32, i32
  }
  func.func @transform_4(%arg0: i32, %arg1: i32) -> (i32, i32) {
    %c0_i32 = arith.constant 0 : i32
    %c0_i32_0 = arith.constant 0 : i32
    return %c0_i32, %arg0 : i32, i32
  }
  func.func @transform_5(%arg0: i32, %arg1: i32) -> (i32, i32) {
    %c0_i32 = arith.constant 0 : i32
    return %arg1, %arg0 : i32, i32
  }
}

</mosaic_0001>

<llo_original>
// kernel: tpu_custom_call.1
$region0: #{tpu_custom_call.1}
  #allocation0 [shape = 'u32[]', space=smem, size = 0x4, offset = 0x4, fixed_abs, tag = 'smem constant byte address 0x4 - core index']
  #allocation1 [shape = 'u32[144,128]{1,0:T(1,128)}', space=vmem, size = 0x12000, scoped, tag = 'internal scratch']
  %s0 = inlined_call_operand.hbm [shape: bf16[16,32], index: 0, kind: input, shape index: {}]
  %s1 = inlined_call_operand.hbm [shape: bf16[32,256], index: 1, kind: input, shape index: {}]
  %s2 = inlined_call_operand.vmem [shape: f32[1,256], index: 2, kind: input, shape index: {}]
  %s3 = inlined_call_operand.hbm [shape: bf16[256,256], index: 3, kind: input, shape index: {}]
  %s4 = inlined_call_operand.vmem [shape: f32[1,256], index: 4, kind: input, shape index: {}]
  %s5 = inlined_call_operand.hbm [shape: f32[16,256], index: 5, kind: output, shape index: {}]
  %s6 = sld [smem:[#allocation0]]
  $region42: #{tpu_custom_call.1} parent=0
    _
  %s8 = ssub.s32 1, %s6
  %s9 = scalar_select 0, %s8, %s6
  $region1: #{tpu_custom_call.1} parent=0
    #allocation2 [shape = 'u8[4096]{0}', space=vmem, size = 0x1000, scoped, tag = 'input window, operand 0, single buffered']
    #allocation3 [shape = 's32[1]{0}', space=sflag, size = 0x4, scoped, tag = 'scoped memory for tpu_custom_call.1']
    #allocation4 [shape = 's32[1]{0}', space=sflag, size = 0x4, scoped, tag = 'scoped memory for tpu_custom_call.1']
    #allocation5 [shape = 'u8[16384]{0}', space=vmem, size = 0x4000, scoped, tag = 'input window, operand 1, single buffered']
    #allocation6 [shape = 's32[1]{0}', space=sflag, size = 0x4, scoped, tag = 'scoped memory for tpu_custom_call.1']
    #allocation7 [shape = 'u8[131072]{0}', space=vmem, size = 0x20000, scoped, tag = 'input window, operand 3, single buffered']
    #allocation8 [shape = 'u8[16384]{0}', space=vmem, size = 0x4000, scoped, tag = 'output window, operand 0, single buffered']
    %10 = vsyncpa [#allocation3], 0
    %11 = vsyncpa [#allocation6], 0
    %12 = vsyncpa [#allocation4], 0
    // Predicated region
    $region2: #{tpu_custom_call.1} parent=1 // pred_check
      _
    $region3: #{tpu_custom_call.1} parent=1 // pred_check_branch
      %14 = sbr.rel (0) target = $region5
    $region4: #{tpu_custom_call.1} parent=1 // pred_region
      %s16 = ssub.s32 128, 128
      %17 = vsyncadd [#allocation3], %s16
      %s18 = sshll.u32 [#allocation2], 4
      %s19 = int_to_ptr.vmem [resolvable:$true] %s18
      %24 = dma.hbm_to_vmem [thread:$0]  %s0, 128, %s19, [#allocation3], 64, 64, 4
    $region5: #{tpu_custom_call.1} parent=1 // pred_fallthru
      _
    // Predicated region
    $region6: #{tpu_custom_call.1} parent=1 // pred_check
      _
    $region7: #{tpu_custom_call.1} parent=1 // pred_check_branch
      %26 = sbr.rel (0) target = $region9
    $region8: #{tpu_custom_call.1} parent=1 // pred_region
      %s28 = ssub.s32 512, 512
      %29 = vsyncadd [#allocation6], %s28
      %s30 = sshll.u32 [#allocation5], 4
      %s31 = int_to_ptr.vmem [resolvable:$true] %s30
      %36 = dma.hbm_to_vmem [thread:$0]  %s1, 512, %s31, [#allocation6], 128, 128, 8
    $region9: #{tpu_custom_call.1} parent=1 // pred_fallthru
      _
    // Predicated region
    $region10: #{tpu_custom_call.1} parent=1 // pred_check
      _
    $region11: #{tpu_custom_call.1} parent=1 // pred_check_branch
      %38 = sbr.rel (0) target = $region13
    $region12: #{tpu_custom_call.1} parent=1 // pred_region
      _
    $region13: #{tpu_custom_call.1} parent=1 // pred_fallthru
      _
    // Predicated region
    $region14: #{tpu_custom_call.1} parent=1 // pred_check
      _
    $region15: #{tpu_custom_call.1} parent=1 // pred_check_branch
      %40 = sbr.rel (0) target = $region17
    $region16: #{tpu_custom_call.1} parent=1 // pred_region
      %s42 = ssub.s32 4096, 4096
      %43 = vsyncadd [#allocation6], %s42
      %s44 = sshll.u32 [#allocation7], 4
      %s45 = int_to_ptr.vmem [resolvable:$true] %s44
      %50 = dma.hbm_to_vmem [thread:$0]  %s3, 4096, %s45, [#allocation6], 128, 128, 8
    $region17: #{tpu_custom_call.1} parent=1 // pred_fallthru
      _
    // Predicated region
    $region18: #{tpu_custom_call.1} parent=1 // pred_check
      _
    $region19: #{tpu_custom_call.1} parent=1 // pred_check_branch
      %52 = sbr.rel (0) target = $region21
    $region20: #{tpu_custom_call.1} parent=1 // pred_region
      _
    $region21: #{tpu_custom_call.1} parent=1 // pred_fallthru
      _
    // Predicated region
    $region22: #{tpu_custom_call.1} parent=1 // pred_check
      _
    $region23: #{tpu_custom_call.1} parent=1 // pred_check_branch
      %54 = sbr.rel (0) target = $region25
    $region24: #{tpu_custom_call.1} parent=1 // pred_region
      %55 = dma.done [#allocation3], 128
    $region25: #{tpu_custom_call.1} parent=1 // pred_fallthru
      _
    // Predicated region
    $region26: #{tpu_custom_call.1} parent=1 // pred_check
      _
    $region27: #{tpu_custom_call.1} parent=1 // pred_check_branch
      %57 = sbr.rel (0) target = $region29
    $region28: #{tpu_custom_call.1} parent=1 // pred_region
      %58 = dma.done [#allocation6], 512
    $region29: #{tpu_custom_call.1} parent=1 // pred_fallthru
      _
    // Predicated region
    $region30: #{tpu_custom_call.1} parent=1 // pred_check
      _
    $region31: #{tpu_custom_call.1} parent=1 // pred_check_branch
      %60 = sbr.rel (0) target = $region33
    $region32: #{tpu_custom_call.1} parent=1 // pred_region
      %61 = dma.done [#allocation6], 4096
    $region33: #{tpu_custom_call.1} parent=1 // pred_fallthru
      _
    %v63 = vld [vmem:[#allocation2] sm:$0xf]
    %v64 = vld [vmem:[#allocation2 + $0x4] sm:$0xf]
    %v65 = vld [vmem:[#allocation5] sm:$0xff]
    %v66 = vld [vmem:[#allocation5 + $0x8] sm:$0xff]
    %v67 = vld [vmem:[#allocation5 + $0x10] sm:$0xff]
    %v68 = vld [vmem:[#allocation5 + $0x18] sm:$0xff]
    %v69 = vld [vmem:[%s2] sm:$0x3]
    %v71 = vlaneseq
    %v72 = vshrl.u32 %v71, 7
    %v73 = vsub.s32 0, %v72
    %v74 = vrot.slane %v69, %v73
    %v75 = vlaneseq
    %v76 = vshrl.u32 %v75, 7
    %v77 = vsub.s32 1, %v76
    %v78 = vrot.slane %v69, %v77
    %v83 = vunpack.c.l.b16 %v63
    %v84 = vunpack.c.l.b16 %v64
    %v85 = vpack.c.b16 %v84, %v83
    %v90 = vunpack.c.l.b16 %v65
    %v91 = vunpack.c.h.b16 %v65
    %v92 = vunpack.c.l.b16 %v66
    %v93 = vunpack.c.h.b16 %v66
    %v94 = vunpack.c.l.b16 %v67
    %v95 = vunpack.c.h.b16 %v67
    %v96 = vunpack.c.l.b16 %v68
    %v97 = vunpack.c.h.b16 %v68
    %v98 = vpack.c.b16 %v92, %v90
    %v99 = vpack.c.b16 %v93, %v91
    %v100 = vpack.c.b16 %v96, %v94
    %v101 = vpack.c.b16 %v97, %v95
    %vm106 = vcmask 261120
    %v108 = vsel %vm106, %v85, 0
    %110 = vmatprep.subr.bf16.mxu0 %v99
    %111 = vmatpush1.bf16.msra.mxu0 %v98
    %112 = vmatprep.subr.bf16.mxu0 %v101
    %113 = vmatpush1.bf16.msra.mxu0 %v100
    %114 = vmatprep.subr.bf16.mxu0 0
    %115 = vmatpush1.bf16.msra.mxu0 0
    %116 = vmatprep.subr.bf16.mxu0 0
    %117 = vmatpush1.bf16.msra.mxu0 0
    %118 = vmatprep.subr.bf16.mxu0 0
    %119 = vmatpush1.bf16.msra.mxu0 0
    %120 = vmatprep.subr.bf16.mxu0 0
    %121 = vmatpush1.bf16.msra.mxu0 0
    %122 = vmatprep.subr.bf16.mxu0 0
    %123 = vmatpush1.bf16.msra.mxu0 0
    %124 = vmatprep.subr.bf16.mxu0 0
    %125 = vmatpush1.bf16.msra.mxu0 0
    %126 = vmatprep.subr.bf16.mxu0 0
    %127 = vmatpush1.bf16.msra.mxu0 0
    %128 = vmatprep.subr.bf16.mxu0 0
    %129 = vmatpush1.bf16.msra.mxu0 0
    %130 = vmatprep.subr.bf16.mxu0 0
    %131 = vmatpush1.bf16.msra.mxu0 0
    %132 = vmatprep.subr.bf16.mxu0 0
    %133 = vmatpush1.bf16.msra.mxu0 0
    %134 = vmatprep.subr.bf16.mxu0 0
    %135 = vmatpush1.bf16.msra.mxu0 0
    %136 = vmatprep.subr.bf16.mxu0 0
    %137 = vmatpush1.bf16.msra.mxu0 0
    %138 = vmatprep.subr.bf16.mxu0 0
    %139 = vmatpush1.bf16.msra.mxu0 0
    %140 = vmatprep.subr.bf16.mxu0 0
    %141 = vmatpush1.bf16.msra.mxu0 0
    %142 = vmatprep.mubr.bf16.mxu0 0
    %143 = vmatmul.mubr.bf16.gmra.mrb[0].mxu0 %v108
    %v144 = vpop.f32.mrb[0].mxu0
    %v145 = vadd.f32 %v74, %v144
    %v146 = vpop.f32.mrb[0].mxu0
    %v147 = vadd.f32 %v78, %v146
    %v148 = vpop.f32.mrb[0].mxu0
    %v149 = vadd.f32 %v74, %v148
    %v150 = vpop.f32.mrb[0].mxu0
    %v151 = vadd.f32 %v78, %v150
    %152 = vdwg.mxu0
    %v153 = vmax.f32 %v145, 0.0
    %v154 = vmax.f32 %v147, 0.0
    %v155 = vmax.f32 %v149, 0.0
    %v156 = vmax.f32 %v151, 0.0
    %v157 = vpack.c.bf16 %v155, %v153
    %v158 = vpack.c.bf16 %v156, %v154
    %v159 = vld [vmem:[#allocation7] sm:$0xff]
    %v160 = vld [vmem:[#allocation7 + $0x8] sm:$0xff]
    %v161 = vld [vmem:[#allocation7 + $0x10] sm:$0xff]
    %v162 = vld [vmem:[#allocation7 + $0x18] sm:$0xff]
    %v163 = vld [vmem:[#allocation7 + $0x20] sm:$0xff]
    %v164 = vld [vmem:[#allocation7 + $0x28] sm:$0xff]
    %v165 = vld [vmem:[#allocation7 + $0x30] sm:$0xff]
    %v166 = vld [vmem:[#allocation7 + $0x38] sm:$0xff]
    %v167 = vld [vmem:[#allocation7 + $0x40] sm:$0xff]
    %v168 = vld [vmem:[#allocation7 + $0x48] sm:$0xff]
    %v169 = vld [vmem:[#allocation7 + $0x50] sm:$0xff]
    %v170 = vld [vmem:[#allocation7 + $0x58] sm:$0xff]
    %v171 = vld [vmem:[#allocation7 + $0x60] sm:$0xff]
    %v172 = vld [vmem:[#allocation7 + $0x68] sm:$0xff]
    %v173 = vld [vmem:[#allocation7 + $0x70] sm:$0xff]
    %v174 = vld [vmem:[#allocation7 + $0x78] sm:$0xff]
    %v175 = vld [vmem:[#allocation7 + $0x80] sm:$0xff]
    %v176 = vld [vmem:[#allocation7 + $0x88] sm:$0xff]
    %v177 = vld [vmem:[#allocation7 + $0x90] sm:$0xff]
    %v178 = vld [vmem:[#allocation7 + $0x98] sm:$0xff]
    %v179 = vld [vmem:[#allocation7 + $0xa0] sm:$0xff]
    %v180 = vld [vmem:[#allocation7 + $0xa8] sm:$0xff]
    %v181 = vld [vmem:[#allocation7 + $0xb0] sm:$0xff]
    %v182 = vld [vmem:[#allocation7 + $0xb8] sm:$0xff]
    %v183 = vld [vmem:[#allocation7 + $0xc0] sm:$0xff]
    %v184 = vld [vmem:[#allocation7 + $0xc8] sm:$0xff]
    %v185 = vld [vmem:[#allocation7 + $0xd0] sm:$0xff]
    %v186 = vld [vmem:[#allocation7 + $0xd8] sm:$0xff]
    %v187 = vld [vmem:[#allocation7 + $0xe0] sm:$0xff]
    %v188 = vld [vmem:[#allocation7 + $0xe8] sm:$0xff]
    %v189 = vld [vmem:[#allocation7 + $0xf0] sm:$0xff]
    %v190 = vld [vmem:[#allocation7 + $0xf8] sm:$0xff]
    %v191 = vld [vmem:[%s4] sm:$0x3]
    %v193 = vlaneseq
    %v194 = vshrl.u32 %v193, 7
    %v195 = vsub.s32 0, %v194
    %v196 = vrot.slane %v191, %v195
    %v197 = vlaneseq
    %v198 = vshrl.u32 %v197, 7
    %v199 = vsub.s32 1, %v198
    %v200 = vrot.slane %v191, %v199
    %v235 = vunpack.c.l.b16 %v159
    %v236 = vunpack.c.h.b16 %v159
    %v237 = vunpack.c.l.b16 %v160
    %v238 = vunpack.c.h.b16 %v160
    %v239 = vunpack.c.l.b16 %v161
    %v240 = vunpack.c.h.b16 %v161
    %v241 = vunpack.c.l.b16 %v162
    %v242 = vunpack.c.h.b16 %v162
    %v243 = vunpack.c.l.b16 %v163
    %v244 = vunpack.c.h.b16 %v163
    %v245 = vunpack.c.l.b16 %v164
    %v246 = vunpack.c.h.b16 %v164
    %v247 = vunpack.c.l.b16 %v165
    %v248 = vunpack.c.h.b16 %v165
    %v249 = vunpack.c.l.b16 %v166
    %v250 = vunpack.c.h.b16 %v166
    %v251 = vunpack.c.l.b16 %v167
    %v252 = vunpack.c.h.b16 %v167
    %v253 = vunpack.c.l.b16 %v168
    %v254 = vunpack.c.h.b16 %v168
    %v255 = vunpack.c.l.b16 %v169
    %v256 = vunpack.c.h.b16 %v169
    %v257 = vunpack.c.l.b16 %v170
    %v258 = vunpack.c.h.b16 %v170
    %v259 = vunpack.c.l.b16 %v171
    %v260 = vunpack.c.h.b16 %v171
    %v261 = vunpack.c.l.b16 %v172
    %v262 = vunpack.c.h.b16 %v172
    %v263 = vunpack.c.l.b16 %v173
    %v264 = vunpack.c.h.b16 %v173
    %v265 = vunpack.c.l.b16 %v174
    %v266 = vunpack.c.h.b16 %v174
    %v267 = vunpack.c.l.b16 %v175
    %v268 = vunpack.c.h.b16 %v175
    %v269 = vunpack.c.l.b16 %v176
    %v270 = vunpack.c.h.b16 %v176
    %v271 = vunpack.c.l.b16 %v177
    %v272 = vunpack.c.h.b16 %v177
    %v273 = vunpack.c.l.b16 %v178
    %v274 = vunpack.c.h.b16 %v178
    %v275 = vunpack.c.l.b16 %v179
    %v276 = vunpack.c.h.b16 %v179
    %v277 = vunpack.c.l.b16 %v180
    %v278 = vunpack.c.h.b16 %v180
    %v279 = vunpack.c.l.b16 %v181
    %v280 = vunpack.c.h.b16 %v181
    %v281 = vunpack.c.l.b16 %v182
    %v282 = vunpack.c.h.b16 %v182
    %v283 = vunpack.c.l.b16 %v183
    %v284 = vunpack.c.h.b16 %v183
    %v285 = vunpack.c.l.b16 %v184
    %v286 = vunpack.c.h.b16 %v184
    %v287 = vunpack.c.l.b16 %v185
    %v288 = vunpack.c.h.b16 %v185
    %v289 = vunpack.c.l.b16 %v186
    %v290 = vunpack.c.h.b16 %v186
    %v291 = vunpack.c.l.b16 %v187
    %v292 = vunpack.c.h.b16 %v187
    %v293 = vunpack.c.l.b16 %v188
    %v294 = vunpack.c.h.b16 %v188
    %v295 = vunpack.c.l.b16 %v189
    %v296 = vunpack.c.h.b16 %v189
    %v297 = vunpack.c.l.b16 %v190
    %v298 = vunpack.c.h.b16 %v190
    %v299 = vpack.c.b16 %v237, %v235
    %v300 = vpack.c.b16 %v238, %v236
    %v301 = vpack.c.b16 %v241, %v239
    %v302 = vpack.c.b16 %v242, %v240
    %v303 = vpack.c.b16 %v245, %v243
    %v304 = vpack.c.b16 %v246, %v244
    %v305 = vpack.c.b16 %v249, %v247
    %v306 = vpack.c.b16 %v250, %v248
    %v307 = vpack.c.b16 %v253, %v251
    %v308 = vpack.c.b16 %v254, %v252
    %v309 = vpack.c.b16 %v257, %v255
    %v310 = vpack.c.b16 %v258, %v256
    %v311 = vpack.c.b16 %v261, %v259
    %v312 = vpack.c.b16 %v262, %v260
    %v313 = vpack.c.b16 %v265, %v263
    %v314 = vpack.c.b16 %v266, %v264
    %v315 = vpack.c.b16 %v269, %v267
    %v316 = vpack.c.b16 %v270, %v268
    %v317 = vpack.c.b16 %v273, %v271
    %v318 = vpack.c.b16 %v274, %v272
    %v319 = vpack.c.b16 %v277, %v275
    %v320 = vpack.c.b16 %v278, %v276
    %v321 = vpack.c.b16 %v281, %v279
    %v322 = vpack.c.b16 %v282, %v280
    %v323 = vpack.c.b16 %v285, %v283
    %v324 = vpack.c.b16 %v286, %v284
    %v325 = vpack.c.b16 %v289, %v287
    %v326 = vpack.c.b16 %v290, %v288
    %v327 = vpack.c.b16 %v293, %v291
    %v328 = vpack.c.b16 %v294, %v292
    %v329 = vpack.c.b16 %v297, %v295
    %v330 = vpack.c.b16 %v298, %v296
    %363 = vmatprep.subr.bf16.mxu0 %v300
    %364 = vmatpush1.bf16.msra.mxu0 %v299
    %365 = vmatprep.subr.bf16.mxu0 %v302
    %366 = vmatpush1.bf16.msra.mxu0 %v301
    %367 = vmatprep.subr.bf16.mxu0 %v304
    %368 = vmatpush1.bf16.msra.mxu0 %v303
    %369 = vmatprep.subr.bf16.mxu0 %v306
    %370 = vmatpush1.bf16.msra.mxu0 %v305
    %371 = vmatprep.subr.bf16.mxu0 %v308
    %372 = vmatpush1.bf16.msra.mxu0 %v307
    %373 = vmatprep.subr.bf16.mxu0 %v310
    %374 = vmatpush1.bf16.msra.mxu0 %v309
    %375 = vmatprep.subr.bf16.mxu0 %v312
    %376 = vmatpush1.bf16.msra.mxu0 %v311
    %377 = vmatprep.subr.bf16.mxu0 %v314
    %378 = vmatpush1.bf16.msra.mxu0 %v313
    %379 = vmatprep.subr.bf16.mxu0 %v316
    %380 = vmatpush1.bf16.msra.mxu0 %v315
    %381 = vmatprep.subr.bf16.mxu0 %v318
    %382 = vmatpush1.bf16.msra.mxu0 %v317
    %383 = vmatprep.subr.bf16.mxu0 %v320
    %384 = vmatpush1.bf16.msra.mxu0 %v319
    %385 = vmatprep.subr.bf16.mxu0 %v322
    %386 = vmatpush1.bf16.msra.mxu0 %v321
    %387 = vmatprep.subr.bf16.mxu0 %v324
    %388 = vmatpush1.bf16.msra.mxu0 %v323
    %389 = vmatprep.subr.bf16.mxu0 %v326
    %390 = vmatpush1.bf16.msra.mxu0 %v325
    %391 = vmatprep.subr.bf16.mxu0 %v328
    %392 = vmatpush1.bf16.msra.mxu0 %v327
    %393 = vmatprep.subr.bf16.mxu0 %v330
    %394 = vmatpush1.bf16.msra.mxu0 %v329
    %395 = vmatprep.mubr.bf16.mxu0 %v158
    %396 = vmatmul.mubr.bf16.gmra.mrb[0].mxu0 %v157
    %v397 = vpop.f32.mrb[0].mxu0
    %v398 = vadd.f32 %v196, %v397
    %v399 = vpop.f32.mrb[0].mxu0
    %v400 = vadd.f32 %v200, %v399
    %v401 = vpop.f32.mrb[0].mxu0
    %v402 = vadd.f32 %v196, %v401
    %v403 = vpop.f32.mrb[0].mxu0
    %v404 = vadd.f32 %v200, %v403
    %405 = vdwg.mxu0
    %v406 = vmax.f32 %v398, 0.0
    %v407 = vmax.f32 %v400, 0.0
    %v408 = vmax.f32 %v402, 0.0
    %v409 = vmax.f32 %v404, 0.0
    %410 = vst [vmem:[#allocation8] sm:$0xff] %v406
    %411 = vst [vmem:[#allocation8 + $0x8] sm:$0xff] %v407
    %412 = vst [vmem:[#allocation8 + $0x10] sm:$0xff] %v408
    %413 = vst [vmem:[#allocation8 + $0x18] sm:$0xff] %v409
    // Predicated region
    $region34: #{tpu_custom_call.1} parent=1 // pred_check
      _
    $region35: #{tpu_custom_call.1} parent=1 // pred_check_branch
      %415 = sbr.rel (0) target = $region37
    $region36: #{tpu_custom_call.1} parent=1 // pred_region
      %s417 = ssub.s32 512, 512
      %418 = vsyncadd [#allocation4], %s417
      %s419 = sshll.u32 [#allocation8], 4
      %s420 = int_to_ptr.vmem [resolvable:$true] %s419
      %425 = dma.vmem_to_hbm [thread:$0]  %s420, 512, %s5, [#allocation4], 256, 256, 16
    $region37: #{tpu_custom_call.1} parent=1 // pred_fallthru
      _
    // Predicated region
    $region38: #{tpu_custom_call.1} parent=1 // pred_check
      _
    $region39: #{tpu_custom_call.1} parent=1 // pred_check_branch
      %427 = sbr.rel (0) target = $region41
    $region40: #{tpu_custom_call.1} parent=1 // pred_region
      %428 = dma.done [#allocation4], 512
    $region41: #{tpu_custom_call.1} parent=1 // pred_fallthru
      _
    %429 = vsyncpa [#allocation3], 1
    %430 = vsyncpa [#allocation6], 1
    %431 = vsyncpa [#allocation4], 1

</llo_original>
